<compile_context>
chip_gen: v5e
topology: v5e:2x2
jax: 0.10.0
libtpu: 0.0.40
codegen_flags: <defaults>
</compile_context>

<pallas_src>
import jax
import jax.numpy as jnp
from jax.experimental import pallas as pl
from jax.experimental.pallas import tpu as pltpu


# --------------------------------------------------------------------------
# Kernel A (pass 1): per-tile partial sum(X) and Gram(X) = X X^T.
# Reads only X; outputs are O(Cin^2) per tile, reduced in plain JAX.
# --------------------------------------------------------------------------
def _stats_kernel(x_ref, gram_ref, sum_ref):
    x = x_ref[0]                                          # (Cin, TS), native dtype
    g = jax.lax.dot_general(                              # X X^T, contract spatial
        x, x, (((1,), (1,)), ((), ())),
        preferred_element_type=jnp.float32)               # (Cin, Cin) fp32
    gram_ref[...] = g[None, None]
    sum_ref[...] = jnp.sum(x.astype(jnp.float32), axis=1, keepdims=True)[None, None]


# --------------------------------------------------------------------------
# Kernel B (pass 2): fused conv + BN.  BN scale folded into the weights;
# out = W_folded @ x_tile + shift, written directly (no intermediate y).
# --------------------------------------------------------------------------
def _conv_bn_kernel(x_ref, w_ref, b_ref, o_ref):
    x = x_ref[0]                                          # (Cin, TS)
    y = jnp.dot(w_ref[...], x,
                preferred_element_type=jnp.float32)       # (Cout, TS) fp32 acc
    o_ref[...] = (y + b_ref[...]).astype(o_ref.dtype)[None]


def _pick_spatial_tile(hw, cin, cout, itemsize):
    """Largest preferred spatial tile that divides HW and fits a conservative
    VMEM budget (double-buffered x + out tiles; weight/shift are tiny)."""
    budget = 24 * 1024 * 1024          # stays inside v7x's 32 MiB default scoped VMEM
    for ts in (4096, 2048, 1024, 512, 256, 128):
        if hw % ts == 0 and 2 * ts * (cin + cout) * itemsize <= budget:
            return ts
    # TODO(synk): HW that is both huge and not divisible by 128 would need a
    #             masked remainder tile; full-extent block is fine for demos.
    return hw


@jax.jit
def linear_block(x_nchw, weight_oihw, gamma, beta, eps=1e-5):
    """Forward of LinearBlock (1x1 conv, bias=False, + training-mode BN).

    x_nchw:      (N, Cin, H, W)      -- PyTorch layout (kept; no transpose)
    weight_oihw: (Cout, Cin, 1, 1)   -- PyTorch Conv2d weight layout
    gamma, beta: (Cout,)             -- BatchNorm2d affine params
    returns:     (N, Cout, H, W)
    """
    n, cin, h, w = x_nchw.shape
    cout = weight_oihw.shape[0]
    hw = h * w
    m = n * hw

    x3d = x_nchw.reshape(n, cin, hw)                        # free reshape
    w2d = weight_oihw.reshape(cout, cin).astype(jnp.float32)

    ts = _pick_spatial_tile(hw, cin, cout, x_nchw.dtype.itemsize)
    grid = (n, hw // ts)

    # ---- Pass 1: partial sum(X) / Gram(X) per (batch, spatial tile) -------
    gram_p, sum_p = pl.pallas_call(
        _stats_kernel,
        out_shape=(
            jax.ShapeDtypeStruct((n, hw // ts, cin, cin), jnp.float32),
            jax.ShapeDtypeStruct((n, hw // ts, cin, 1), jnp.float32),
        ),
        grid_spec=pltpu.PrefetchScalarGridSpec(
            num_scalar_prefetch=0,
            grid=grid,
            in_specs=[pl.BlockSpec((1, cin, ts), lambda i, j: (i, 0, j))],
            out_specs=[
                pl.BlockSpec((1, 1, cin, cin), lambda i, j: (i, j, 0, 0)),
                pl.BlockSpec((1, 1, cin, 1), lambda i, j: (i, j, 0, 0)),
            ],
        ),
        compiler_params=pltpu.CompilerParams(
            dimension_semantics=("parallel", "parallel")),
    )(x3d)

    gram = jnp.sum(gram_p, axis=(0, 1))                     # (Cin, Cin)
    sum_x = jnp.sum(sum_p, axis=(0, 1))[:, 0]               # (Cin,)

    # ---- Tiny per-channel glue (fp32): analytic BN stats -> fold into conv
    hp = jax.lax.Precision.HIGHEST
    inv_m = 1.0 / float(m)
    mean = jnp.dot(w2d, sum_x, precision=hp) * inv_m                        # (Cout,)
    ey2 = jnp.einsum("oc,cd,od->o", w2d, gram, w2d, precision=hp) * inv_m   # E[y^2]
    var = jnp.maximum(ey2 - mean * mean, 0.0)               # biased var (training BN)
    scale = gamma.astype(jnp.float32) * jax.lax.rsqrt(var + eps)
    shift = beta.astype(jnp.float32) - mean * scale
    w_folded = (w2d * scale[:, None]).astype(x_nchw.dtype)  # (Cout, Cin)
    shift_col = shift.reshape(cout, 1)                      # fp32 epilogue add

    # ---- Pass 2: fused conv + BN, final output written directly -----------
    out3d = pl.pallas_call(
        _conv_bn_kernel,
        out_shape=jax.ShapeDtypeStruct((n, cout, hw), x_nchw.dtype),
        grid_spec=pltpu.PrefetchScalarGridSpec(
            num_scalar_prefetch=0,
            grid=grid,
            in_specs=[
                pl.BlockSpec((1, cin, ts), lambda i, j: (i, 0, j)),
                pl.BlockSpec((cout, cin), lambda i, j: (0, 0)),   # resident weight
                pl.BlockSpec((cout, 1), lambda i, j: (0, 0)),     # resident shift
            ],
            out_specs=pl.BlockSpec((1, cout, ts), lambda i, j: (i, 0, j)),
        ),
        compiler_params=pltpu.CompilerParams(
            dimension_semantics=("parallel", "parallel")),
    )(x3d, w_folded, shift_col)

    return out3d.reshape(n, cout, h, w)


def _reference(x_nchw, weight_oihw, gamma, beta, eps=1e-5):
    """Pure-JAX reference: 1x1 conv + training-mode BatchNorm2d."""
    n, cin, h, w = x_nchw.shape
    cout = weight_oihw.shape[0]
    w2d = weight_oihw.reshape(cout, cin)
    y = jnp.einsum("nchw,oc->nohw", x_nchw, w2d,
                   precision=jax.lax.Precision.HIGHEST)
    mean = jnp.mean(y, axis=(0, 2, 3), keepdims=True)
    var = jnp.mean((y - mean) ** 2, axis=(0, 2, 3), keepdims=True)
    y_hat = (y - mean) * jax.lax.rsqrt(var + eps)
    return y_hat * gamma[None, :, None, None] + beta[None, :, None, None]


if __name__ == "__main__":
    key = jax.random.PRNGKey(0)
    k_x, k_w = jax.random.split(key)

    N, Cin, H, W = 2, 4, 16, 16
    Cout = 8

    x = jax.random.normal(k_x, (N, Cin, H, W), dtype=jnp.float32)
    conv_weight = jax.random.normal(k_w, (Cout, Cin, 1, 1), dtype=jnp.float32) * 0.1
    gamma = jnp.ones((Cout,), dtype=jnp.float32)   # BatchNorm2d weight init
    beta = jnp.zeros((Cout,), dtype=jnp.float32)   # BatchNorm2d bias init

    out = linear_block(x, conv_weight, gamma, beta)
    out = jax.block_until_ready(out)

    ref = _reference(x, conv_weight, gamma, beta)
    assert out.shape == (N, Cout, H, W)
    assert jnp.allclose(out, ref, atol=1e-4, rtol=1e-4), "mismatch vs reference"

    print("KERNEL_OK")
</pallas_src>

<mosaic_0001>
module attributes {stable_mosaic.version = 11 : i64} {
  func.func @_stats_kernel(%arg0: i32, %arg1: i32, %arg2: memref<1x4x256xf32, #tpu.memory_space<vmem>>, %arg3: memref<1x1x4x4xf32, #tpu.memory_space<vmem>>, %arg4: memref<1x1x4x1xf32, #tpu.memory_space<vmem>>) attributes {dimension_semantics = [#tpu.dimension_semantics<parallel>, #tpu.dimension_semantics<parallel>], iteration_bounds = array<i64: 2, 1>, scalar_prefetch = 0 : i64, scratch_operands = 0 : i64, tpu.core_type = #tpu.core_type<tc>, window_params = [{transform_indices = @transform_0, window_bounds = array<i64: 1, 4, 256>}, {transform_indices = @transform_1, window_bounds = array<i64: 1, 1, 4, 4>}, {transform_indices = @transform_2, window_bounds = array<i64: 1, 1, 4, 1>}]} {
    %c0 = arith.constant 0 : index
    %c0_0 = arith.constant 0 : index
    %c0_1 = arith.constant 0 : index
    %0 = vector.load %arg2[%c0, %c0_0, %c0_1] : memref<1x4x256xf32, #tpu.memory_space<vmem>>, vector<1x4x256xf32>
    %1 = vector.shape_cast %0 : vector<1x4x256xf32> to vector<4x256xf32>
    %cst = arith.constant dense<0.000000e+00> : vector<4x4xf32>
    %2 = tpu.matmul %1, %1, %cst {dimension_numbers = #tpu.dot_dimension_numbers<[1], [1], [0], [0], [0, 0, 1, 0], [], []>} : vector<4x256xf32>, vector<4x256xf32>, vector<4x4xf32> -> vector<4x4xf32>
    %3 = vector.shape_cast %2 : vector<4x4xf32> to vector<1x1x4x4xf32>
    %c0_2 = arith.constant 0 : index
    %c0_3 = arith.constant 0 : index
    %c0_4 = arith.constant 0 : index
    %c0_5 = arith.constant 0 : index
    %4 = vector.load %arg3[%c0_2, %c0_3, %c0_4, %c0_5] : memref<1x1x4x4xf32, #tpu.memory_space<vmem>>, vector<1x1x4x4xf32>
    tpu.vector_store %arg3[%c0_2, %c0_3, %c0_4, %c0_5], %3 {strides = array<i32>} : memref<1x1x4x4xf32, #tpu.memory_space<vmem>>, vector<1x1x4x4xf32>,
    %cst_6 = arith.constant dense<0.000000e+00> : vector<4xf32>
    %5 = vector.multi_reduction <add>, %1, %cst_6 [1] : vector<4x256xf32> to vector<4xf32>
    %6 = vector.shape_cast %5 : vector<4xf32> to vector<4x1xf32>
    %7 = vector.shape_cast %6 : vector<4x1xf32> to vector<1x1x4x1xf32>
    %c0_7 = arith.constant 0 : index
    %c0_8 = arith.constant 0 : index
    %c0_9 = arith.constant 0 : index
    %c0_10 = arith.constant 0 : index
    %8 = vector.load %arg4[%c0_7, %c0_8, %c0_9, %c0_10] : memref<1x1x4x1xf32, #tpu.memory_space<vmem>>, vector<1x1x4x1xf32>
    tpu.vector_store %arg4[%c0_7, %c0_8, %c0_9, %c0_10], %7 {strides = array<i32>} : memref<1x1x4x1xf32, #tpu.memory_space<vmem>>, vector<1x1x4x1xf32>,
    return
  }
  func.func @transform_0(%arg0: i32, %arg1: i32) -> (i32, i32, i32) {
    %c0_i32 = arith.constant 0 : i32
    %c0_i32_0 = arith.constant 0 : i32
    return %arg0, %c0_i32, %arg1 : i32, i32, i32
  }
  func.func @transform_1(%arg0: i32, %arg1: i32) -> (i32, i32, i32, i32) {
    %c0_i32 = arith.constant 0 : i32
    %c0_i32_0 = arith.constant 0 : i32
    %c0_i32_1 = arith.constant 0 : i32
    return %arg0, %arg1, %c0_i32, %c0_i32_0 : i32, i32, i32, i32
  }
  func.func @transform_2(%arg0: i32, %arg1: i32) -> (i32, i32, i32, i32) {
    %c0_i32 = arith.constant 0 : i32
    %c0_i32_0 = arith.constant 0 : i32
    %c0_i32_1 = arith.constant 0 : i32
    return %arg0, %arg1, %c0_i32, %c0_i32_0 : i32, i32, i32, i32
  }
}

module attributes {stable_mosaic.version = 11 : i64} {
  func.func @_conv_bn_kernel(%arg0: i32, %arg1: i32, %arg2: memref<1x4x256xf32, #tpu.memory_space<vmem>>, %arg3: memref<8x4xf32, #tpu.memory_space<vmem>>, %arg4: memref<8x1xf32, #tpu.memory_space<vmem>>, %arg5: memref<1x8x256xf32, #tpu.memory_space<vmem>>) attributes {dimension_semantics = [#tpu.dimension_semantics<parallel>, #tpu.dimension_semantics<parallel>], iteration_bounds = array<i64: 2, 1>, scalar_prefetch = 0 : i64, scratch_operands = 0 : i64, tpu.core_type = #tpu.core_type<tc>, window_params = [{transform_indices = @transform_0, window_bounds = array<i64: 1, 4, 256>}, {pipeline_mode = #tpu.pipeline_mode<synchronous>, transform_indices = @transform_1, window_bounds = array<i64: 8, 4>}, {pipeline_mode = #tpu.pipeline_mode<synchronous>, transform_indices = @transform_2, window_bounds = array<i64: 8, 1>}, {transform_indices = @transform_3, window_bounds = array<i64: 1, 8, 256>}]} {
    %c0 = arith.constant 0 : index
    %c0_0 = arith.constant 0 : index
    %c0_1 = arith.constant 0 : index
    %0 = vector.load %arg2[%c0, %c0_0, %c0_1] : memref<1x4x256xf32, #tpu.memory_space<vmem>>, vector<1x4x256xf32>
    %1 = vector.shape_cast %0 : vector<1x4x256xf32> to vector<4x256xf32>
    %c0_2 = arith.constant 0 : index
    %c0_3 = arith.constant 0 : index
    %2 = vector.load %arg3[%c0_2, %c0_3] : memref<8x4xf32, #tpu.memory_space<vmem>>, vector<8x4xf32>
    %cst = arith.constant dense<0.000000e+00> : vector<8x256xf32>
    %3 = tpu.matmul %2, %1, %cst {dimension_numbers = #tpu.dot_dimension_numbers<[1], [0], [0], [1], [0, 0, 1, 1], [], []>} : vector<8x4xf32>, vector<4x256xf32>, vector<8x256xf32> -> vector<8x256xf32>
    %c0_4 = arith.constant 0 : index
    %c0_5 = arith.constant 0 : index
    %4 = vector.load %arg4[%c0_4, %c0_5] : memref<8x1xf32, #tpu.memory_space<vmem>>, vector<8x1xf32>
    %5 = vector.broadcast %4 : vector<8x1xf32> to vector<8x256xf32>
    %6 = arith.addf %3, %5 : vector<8x256xf32>
    %7 = vector.shape_cast %6 : vector<8x256xf32> to vector<1x8x256xf32>
    %c0_6 = arith.constant 0 : index
    %c0_7 = arith.constant 0 : index
    %c0_8 = arith.constant 0 : index
    %8 = vector.load %arg5[%c0_6, %c0_7, %c0_8] : memref<1x8x256xf32, #tpu.memory_space<vmem>>, vector<1x8x256xf32>
    tpu.vector_store %arg5[%c0_6, %c0_7, %c0_8], %7 {strides = array<i32>} : memref<1x8x256xf32, #tpu.memory_space<vmem>>, vector<1x8x256xf32>,
    return
  }
  func.func @transform_0(%arg0: i32, %arg1: i32) -> (i32, i32, i32) {
    %c0_i32 = arith.constant 0 : i32
    %c0_i32_0 = arith.constant 0 : i32
    return %arg0, %c0_i32, %arg1 : i32, i32, i32
  }
  func.func @transform_1(%arg0: i32, %arg1: i32) -> (i32, i32) {
    %c0_i32 = arith.constant 0 : i32
    %c0_i32_0 = arith.constant 0 : i32
    %c0_i32_1 = arith.constant 0 : i32
    return %c0_i32, %c0_i32_0 : i32, i32
  }
  func.func @transform_2(%arg0: i32, %arg1: i32) -> (i32, i32) {
    %c0_i32 = arith.constant 0 : i32
    %c0_i32_0 = arith.constant 0 : i32
    %c0_i32_1 = arith.constant 0 : i32
    return %c0_i32, %c0_i32_0 : i32, i32
  }
  func.func @transform_3(%arg0: i32, %arg1: i32) -> (i32, i32, i32) {
    %c0_i32 = arith.constant 0 : i32
    %c0_i32_0 = arith.constant 0 : i32
    return %arg0, %c0_i32, %arg1 : i32, i32, i32
  }
}

</mosaic_0001>

<llo_original>
// kernel: linear_block.2
$region0: #{linear_block.2}
  #allocation0 [shape = 'u32[]', space=smem, size = 0x4, offset = 0x4, fixed_abs, tag = 'smem constant byte address 0x4 - core index']
  #allocation1 [shape = 'u32[72,128]{1,0:T(1,128)}', space=vmem, size = 0x9000, scoped, tag = 'internal scratch']
  %s0 = inlined_call_operand.vmem [shape: f32[2,4,256], index: 0, kind: input, shape index: {}]
  %s1 = inlined_call_operand.vmem [shape: f32[2,1,4,4], index: 1, kind: output, shape index: {0}]
  %s2 = inlined_call_operand.vmem [shape: f32[2,1,4,1], index: 2, kind: output, shape index: {1}]
  %3 = xla_tuple %s1, %s2
  %s4 = sld [smem:[#allocation0]]
  $region45: #{linear_block.2} parent=0
    _
  %s6 = ssub.s32 1, %s4
  %s7 = scalar_select 0, %s6, %s4
  loop: start=0, step=1, limit=4
  $region2: #{linear_block.2} parent=0 // loop_pre_header
    _
  $region3: #{linear_block.2} parent=0 // loop_header
    %s9 = sphi 0, %s13
    %p10 = scmp.ge.s32.totalorder %s9, 4
    %s16 = sphi 0, %s28
    %s17 = sphi 0, %s24
    %s18 = sphi 0, %s16
    %s19 = sphi 0, %s17
    %s20 = sphi 0, %s18
    %s21 = sphi 0, %s19
    %s33 = sphi 0, %s35
    %s36 = sphi 0, %s33
    %s37 = sphi 0, %s36
    %s53 = sphi 0, %s37
    %s61 = sphi 0, %s63
    %s64 = sphi 0, %s61
    %s65 = sphi 0, %s64
    %s81 = sphi 0, %s65
    %s89 = sphi 0, %s91
    %s92 = sphi 0, %s89
    %s93 = sphi 0, %s92
    %s109 = sphi 0, %s93
  $region4: #{linear_block.2} parent=0 // loop_header_branch
    %12 = sbr.rel (%p10) target = $region8
  $region5: #{linear_block.2} parent=0 // loop_body
    %s14 = ssub.s32 %s9, 1
    %s15 = ssub.s32 %s9, 2
    %s22 = sadd.s32 1, %s17
    %p23 = scmp.ge.s32.totalorder %s22, 1
    %s24 = scalar_select %p23, 0, %s22
    %s25 = sadd.s32 1, %s16
    %s26 = scalar_select %p23, %s25, %s16
    %p27 = scmp.ge.s32.totalorder %s26, 2
    %s28 = scalar_select %p27, 0, %s26
    %s29 = ssub.s32 %s16, %s28
    %s30 = ssub.s32 %s17, %s24
    %s31 = sor.u32 %s29, %s30
    %p32 = scmp.eq.s32.totalorder %s31, 0
    %s34 = sadd.s32 %s33, 1
    %s35 = scalar_select %p32, %s33, %s34
    %p38 = pneg %p32
    %p39 = scmp.eq.s32.totalorder %s9, 1
    %p40 = por %p38, %p39
    %p41 = scmp.ne.s32.totalorder %s33, %s36
    %p42 = scmp.eq.s32.totalorder %s9, 0
    %p43 = por %p41, %p42
    %p44 = scmp.ne.s32.totalorder %s33, %s36
    %p45 = scmp.eq.s32.totalorder %s14, 1
    %p46 = por %p44, %p45
    %p47 = scmp.ne.s32.totalorder %s36, %s37
    %p48 = scmp.eq.s32.totalorder %s14, 0
    %p49 = por %p47, %p48
    %p50 = scmp.ne.s32.totalorder %s36, %s37
    %p51 = scmp.eq.s32.totalorder %s15, 1
    %p52 = por %p50, %p51
    %p54 = scmp.ne.s32.totalorder %s37, %s53
    %p55 = scmp.eq.s32.totalorder %s15, 0
    %p56 = por %p54, %p55
    %s57 = ssub.s32 %s16, %s28
    %s58 = ssub.s32 %s17, %s24
    %s59 = sor.u32 %s57, %s58
    %p60 = scmp.eq.s32.totalorder %s59, 0
    %s62 = sadd.s32 %s61, 1
    %s63 = scalar_select %p60, %s61, %s62
    %p66 = pneg %p60
    %p67 = scmp.eq.s32.totalorder %s9, 1
    %p68 = por %p66, %p67
    %p69 = scmp.ne.s32.totalorder %s61, %s64
    %p70 = scmp.eq.s32.totalorder %s9, 0
    %p71 = por %p69, %p70
    %p72 = scmp.ne.s32.totalorder %s61, %s64
    %p73 = scmp.eq.s32.totalorder %s14, 1
    %p74 = por %p72, %p73
    %p75 = scmp.ne.s32.totalorder %s64, %s65
    %p76 = scmp.eq.s32.totalorder %s14, 0
    %p77 = por %p75, %p76
    %p78 = scmp.ne.s32.totalorder %s64, %s65
    %p79 = scmp.eq.s32.totalorder %s15, 1
    %p80 = por %p78, %p79
    %p82 = scmp.ne.s32.totalorder %s65, %s81
    %p83 = scmp.eq.s32.totalorder %s15, 0
    %p84 = por %p82, %p83
    %s85 = ssub.s32 %s16, %s28
    %s86 = ssub.s32 %s17, %s24
    %s87 = sor.u32 %s85, %s86
    %p88 = scmp.eq.s32.totalorder %s87, 0
    %s90 = sadd.s32 %s89, 1
    %s91 = scalar_select %p88, %s89, %s90
    %p94 = pneg %p88
    %p95 = scmp.eq.s32.totalorder %s9, 1
    %p96 = por %p94, %p95
    %p97 = scmp.ne.s32.totalorder %s89, %s92
    %p98 = scmp.eq.s32.totalorder %s9, 0
    %p99 = por %p97, %p98
    %p100 = scmp.ne.s32.totalorder %s89, %s92
    %p101 = scmp.eq.s32.totalorder %s14, 1
    %p102 = por %p100, %p101
    %p103 = scmp.ne.s32.totalorder %s92, %s93
    %p104 = scmp.eq.s32.totalorder %s14, 0
    %p105 = por %p103, %p104
    %p106 = scmp.ne.s32.totalorder %s92, %s93
    %p107 = scmp.eq.s32.totalorder %s15, 1
    %p108 = por %p106, %p107
    %p110 = scmp.ne.s32.totalorder %s93, %s109
    %p111 = scmp.eq.s32.totalorder %s15, 0
    %p112 = por %p110, %p111
    %p113 = scmp.le.s32.totalorder 1, %s9
    %p114 = scmp.lt.s32.totalorder %s9, 3
    %p115 = pnand %p113, %p114
    %p116 = pneg %p115
    // Predicated region
    $region9: #{linear_block.2} parent=5 // pred_check
      _
    $region10: #{linear_block.2} parent=5 // pred_check_branch
      %118 = sbr.rel (%p115) target = $region12
    $region11: #{linear_block.2} parent=5 // pred_region
      %s119 = ssub.s32 %s9, 1
    $region12: #{linear_block.2} parent=5 // pred_fallthru
      _
    %p120 = scmp.lt.s32.totalorder %s9, 2
    // Predicated region
    $region13: #{linear_block.2} parent=5 // pred_check
      %p121 = pneg %p120
    $region14: #{linear_block.2} parent=5 // pred_check_branch
      %123 = sbr.rel (%p121) target = $region16
    $region15: #{linear_block.2} parent=5 // pred_region
      // Predicated region
      $region17: #{linear_block.2} parent=15 // pred_check
        %p124 = pneg %p43
      $region18: #{linear_block.2} parent=15 // pred_check_branch
        %126 = sbr.rel (%p124) target = $region20
      $region19: #{linear_block.2} parent=15 // pred_region
        %s127 = smul.u32 2, %s17
        %p128 = scmp.lt.s32.totalorder %s16, 1
        %s129 = scalar_select %p128, %s16, 1
        %p130 = scmp.lt.s32.totalorder %s127, 1
        %s131 = scalar_select %p130, %s127, 1
        %s132 = smul.addr %s129, 2
        %s133 = sadd.s32 %s131, %s132
        %s134 = smul.addr %s133, 4
        %s135 = scalar_lea.vmem %s0, %s134
        %s136 = smul.u32 2, %s17
      $region20: #{linear_block.2} parent=15 // pred_fallthru
        _
    $region16: #{linear_block.2} parent=5 // pred_fallthru
      _
    %p137 = scmp.le.s32.totalorder 1, %s9
    %p138 = scmp.lt.s32.totalorder %s9, 3
    %p139 = pnand %p137, %p138
    %p140 = pneg %p139
    // Predicated region
    $region21: #{linear_block.2} parent=5 // pred_check
      _
    $region22: #{linear_block.2} parent=5 // pred_check_branch
      %142 = sbr.rel (%p139) target = $region24
    $region23: #{linear_block.2} parent=5 // pred_region
      %s143 = ssub.s32 %s9, 1
      %s144 = smul.u32 2, %s19
      %p145 = scmp.lt.s32.totalorder %s18, 1
      %s146 = scalar_select %p145, %s18, 1
      %p147 = scmp.lt.s32.totalorder %s144, 1
      %s148 = scalar_select %p147, %s144, 1
      %s149 = smul.addr %s146, 2
      %s150 = sadd.s32 %s148, %s149
      %s151 = smul.addr %s150, 4
      %s152 = scalar_lea.vmem %s0, %s151
      %p153 = pneg %p49
      %p154 = pneg %p46
      %p155 = pneg %p77
      %p156 = pneg %p74
      %p157 = scmp.lt.s32.totalorder %s18, 1
      %s158 = scalar_select %p157, %s18, 1
      %p159 = scmp.lt.s32.totalorder %s19, 0
      %s160 = scalar_select %p159, %s19, 0
      %s161 = sadd.s32 %s160, %s158
      %s162 = smul.addr %s161, 4
      %s163 = scalar_lea.vmem %s1, %s162
      %p164 = pneg %p105
      %p165 = pneg %p102
      %p166 = scmp.lt.s32.totalorder %s18, 1
      %s167 = scalar_select %p166, %s18, 1
      %p168 = scmp.lt.s32.totalorder %s19, 0
      %s169 = scalar_select %p168, %s19, 0
      %s170 = sadd.s32 %s169, %s167
      %s171 = smul.addr %s170, 4
      %s172 = scalar_lea.vmem %s2, %s171
      %s173 = smul.u32 2, %s19
      %p174 = scmp.lt.s32.totalorder %s18, 1
      %s175 = scalar_select %p174, %s18, 1
      %p176 = scmp.lt.s32.totalorder %s173, 1
      %s177 = scalar_select %p176, %s173, 1
      %s178 = smul.addr %s175, 2
      %s179 = sadd.s32 %s177, %s178
      %s180 = smul.addr %s179, 4
      %s181 = scalar_lea.vmem %s0, %s180
      %s182 = smul.u32 2, %s19
      %p183 = scmp.lt.s32.totalorder %s18, 1
      %s184 = scalar_select %p183, %s18, 1
      %p185 = scmp.lt.s32.totalorder %s19, 0
      %s186 = scalar_select %p185, %s19, 0
      %s187 = sadd.s32 %s186, %s184
      %s188 = smul.addr %s187, 4
      %s189 = scalar_lea.vmem %s1, %s188
      %p190 = scmp.lt.s32.totalorder %s18, 1
      %s191 = scalar_select %p190, %s18, 1
      %p192 = scmp.lt.s32.totalorder %s19, 0
      %s193 = scalar_select %p192, %s19, 0
      %s194 = sadd.s32 %s193, %s191
      %s195 = smul.addr %s194, 4
      %s196 = scalar_lea.vmem %s2, %s195
      %v197 = vld [vmem:[%s181] sm:$0xff]
      %199 = vst [vmem:[#allocation1] ss:$2 sm:$0xff] %v197
      %v200 = vld.sshfl [vmem:[#allocation1] sm:$0xff pattern:$0x75316420]
      %v201 = vld.sshfl [vmem:[#allocation1 + $0x8] sm:$0xff pattern:$0x75316420]
      %204 = vst [vmem:[#allocation1] ss:$2 sm:$0xff] %v197
      %v205 = vld.sshfl [vmem:[#allocation1] sm:$0xff pattern:$0x75316420]
      %v206 = vld.sshfl [vmem:[#allocation1 + $0x8] sm:$0xff pattern:$0x75316420]
      %209 = vmatpush.xpose.msra.mxu0 0.0
      %210 = vmatpush.xpose.msra.mxu0 0.0
      %211 = vmatpush.xpose.msra.mxu0 0.0
      %212 = vmatpush.xpose.msra.mxu0 0.0
      %213 = vmatpush.xpose.msra.mxu0 0.0
      %214 = vmatpush.xpose.msra.mxu0 0.0
      %215 = vmatpush.xpose.msra.mxu0 0.0
      %216 = vmatpush.xpose.msra.mxu0 0.0
      %217 = vmatpush.xpose.msra.mxu0 0.0
      %218 = vmatpush.xpose.msra.mxu0 0.0
      %219 = vmatpush.xpose.msra.mxu0 0.0
      %220 = vmatpush.xpose.msra.mxu0 0.0
      %221 = vmatpush.xpose.msra.mxu0 0.0
      %222 = vmatpush.xpose.msra.mxu0 0.0
      %223 = vmatpush.xpose.msra.mxu0 0.0
      %224 = vmatpush.xpose.msra.mxu0 %v205
      %225 = vmatmul.f32.gmra.mxu0 %v200
      %v226 = vpop.f32.mrf.mxu0
      %v227 = vadd.f32 0.0, %v226
      %228 = vdwg.mxu0
      %229 = vmatpush.xpose.msra.mxu0 0.0
      %230 = vmatpush.xpose.msra.mxu0 0.0
      %231 = vmatpush.xpose.msra.mxu0 0.0
      %232 = vmatpush.xpose.msra.mxu0 0.0
      %233 = vmatpush.xpose.msra.mxu0 0.0
      %234 = vmatpush.xpose.msra.mxu0 0.0
      %235 = vmatpush.xpose.msra.mxu0 0.0
      %236 = vmatpush.xpose.msra.mxu0 0.0
      %237 = vmatpush.xpose.msra.mxu0 0.0
      %238 = vmatpush.xpose.msra.mxu0 0.0
      %239 = vmatpush.xpose.msra.mxu0 0.0
      %240 = vmatpush.xpose.msra.mxu0 0.0
      %241 = vmatpush.xpose.msra.mxu0 0.0
      %242 = vmatpush.xpose.msra.mxu0 0.0
      %243 = vmatpush.xpose.msra.mxu0 0.0
      %244 = vmatpush.xpose.msra.mxu0 %v206
      %245 = vmatmul.f32.gmra.mxu0 %v201
      %v246 = vpop.f32.mrf.mxu0
      %v247 = vadd.f32 %v227, %v246
      %248 = vdwg.mxu0
      %vm249 = vcmask 27648
      %250 = vst.msk [vmem:[%s189] sm:$0xf] %vm249, %v247
      %251 = vst [vmem:[#allocation1] ss:$2 sm:$0xff] %v197
      %v252 = vld.sshfl [vmem:[#allocation1] sm:$0xff pattern:$0x75316420]
      %v253 = vld.sshfl [vmem:[#allocation1 + $0x8] sm:$0xff pattern:$0x75316420]
      %vm256 = vcmask 1043456
      %v257 = vsel %vm256, %v252, 0.0
      %v258 = vsel %vm256, %v253, 0.0
      %v259 = vadd.f32 %v257, %v258
      %260 = vadd.xlane.f32.xlu0 %v259
      %v261 = vpop.xlane.xlu0 %260
      %vm262 = vcmask 3072
      %263 = vst.msk [vmem:[%s196] sm:$0xf] %vm262, %v261
      %p264 = scmp.lt.s32.totalorder %s18, 1
      %s265 = scalar_select %p264, %s18, 1
      %p266 = scmp.lt.s32.totalorder %s19, 0
      %s267 = scalar_select %p266, %s19, 0
      %s268 = sadd.s32 %s267, %s265
      %s269 = smul.addr %s268, 4
      %s270 = scalar_lea.vmem %s1, %s269
      %p271 = scmp.lt.s32.totalorder %s18, 1
      %s272 = scalar_select %p271, %s18, 1
      %p273 = scmp.lt.s32.totalorder %s19, 0
      %s274 = scalar_select %p273, %s19, 0
      %s275 = sadd.s32 %s274, %s272
      %s276 = smul.addr %s275, 4
      %s277 = scalar_lea.vmem %s2, %s276
      // Predicated region
      $region25: #{linear_block.2} parent=23 // pred_check
        %p278 = pneg %p74
      $region26: #{linear_block.2} parent=23 // pred_check_branch
        %280 = sbr.rel (%p278) target = $region28
      $region27: #{linear_block.2} parent=23 // pred_region
        _
      $region28: #{linear_block.2} parent=23 // pred_fallthru
        _
      // Predicated region
      $region29: #{linear_block.2} parent=23 // pred_check
        %p281 = pneg %p102
      $region30: #{linear_block.2} parent=23 // pred_check_branch
        %283 = sbr.rel (%p281) target = $region32
      $region31: #{linear_block.2} parent=23 // pred_region
        _
      $region32: #{linear_block.2} parent=23 // pred_fallthru
        _
    $region24: #{linear_block.2} parent=5 // pred_fallthru
      _
    %p284 = scmp.le.s32.totalorder 2, %s9
    // Predicated region
    $region33: #{linear_block.2} parent=5 // pred_check
      %p285 = pneg %p284
    $region34: #{linear_block.2} parent=5 // pred_check_branch
      %287 = sbr.rel (%p285) target = $region36
    $region35: #{linear_block.2} parent=5 // pred_region
      %s288 = ssub.s32 %s9, 2
      // Predicated region
      $region37: #{linear_block.2} parent=35 // pred_check
        %p289 = pneg %p80
      $region38: #{linear_block.2} parent=35 // pred_check_branch
        %291 = sbr.rel (%p289) target = $region40
      $region39: #{linear_block.2} parent=35 // pred_region
        %p292 = scmp.lt.s32.totalorder %s20, 1
        %s293 = scalar_select %p292, %s20, 1
        %p294 = scmp.lt.s32.totalorder %s21, 0
        %s295 = scalar_select %p294, %s21, 0
        %s296 = sadd.s32 %s295, %s293
        %s297 = smul.addr %s296, 4
        %s298 = scalar_lea.vmem %s1, %s297
      $region40: #{linear_block.2} parent=35 // pred_fallthru
        _
      // Predicated region
      $region41: #{linear_block.2} parent=35 // pred_check
        %p299 = pneg %p108
      $region42: #{linear_block.2} parent=35 // pred_check_branch
        %301 = sbr.rel (%p299) target = $region44
      $region43: #{linear_block.2} parent=35 // pred_region
        %p302 = scmp.lt.s32.totalorder %s20, 1
        %s303 = scalar_select %p302, %s20, 1
        %p304 = scmp.lt.s32.totalorder %s21, 0
        %s305 = scalar_select %p304, %s21, 0
        %s306 = sadd.s32 %s305, %s303
        %s307 = smul.addr %s306, 4
        %s308 = scalar_lea.vmem %s2, %s307
      $region44: #{linear_block.2} parent=35 // pred_fallthru
        _
    $region36: #{linear_block.2} parent=5 // pred_fallthru
      _
  $region6: #{linear_block.2} parent=0 // loop_footer
    %s13 = sadd.s32 1, %s9
  $region7: #{linear_block.2} parent=0 // loop_footer_branch
    %8 = sbr.rel target = $region3
  $region8: #{linear_block.2} parent=0 // loop_exit
    _

// kernel: linear_block.3
$region0: #{linear_block.3}
  #allocation0 [shape = 'u32[]', space=smem, size = 0x4, offset = 0x4, fixed_abs, tag = 'smem constant byte address 0x4 - core index']
  #allocation1 [shape = 'u32[72,128]{1,0:T(1,128)}', space=vmem, size = 0x9000, scoped, tag = 'internal scratch']
  %s0 = inlined_call_operand.vmem [shape: f32[2,4,256], index: 0, kind: input, shape index: {}]
  %s1 = inlined_call_operand.vmem [shape: f32[8,4], index: 1, kind: input, shape index: {}]
  %s2 = inlined_call_operand.vmem [shape: f32[8,1], index: 2, kind: input, shape index: {}]
  %s3 = inlined_call_operand.vmem [shape: f32[2,8,256], index: 3, kind: output, shape index: {}]
  %s4 = sld [smem:[#allocation0]]
  $region45: #{linear_block.3} parent=0
    _
  %s6 = ssub.s32 1, %s4
  %s7 = scalar_select 0, %s6, %s4
  loop: start=0, step=1, limit=4
  $region2: #{linear_block.3} parent=0 // loop_pre_header
    _
  $region3: #{linear_block.3} parent=0 // loop_header
    %s9 = sphi 0, %s13
    %p10 = scmp.ge.s32.totalorder %s9, 4
    %s16 = sphi 0, %s28
    %s17 = sphi 0, %s24
    %s18 = sphi 0, %s16
    %s19 = sphi 0, %s17
    %s20 = sphi 0, %s18
    %s21 = sphi 0, %s19
    %s33 = sphi 0, %s35
    %s36 = sphi 0, %s33
    %s37 = sphi 0, %s36
    %s53 = sphi 0, %s37
    %s57 = sphi 0, %s57
    %s59 = sphi 0, %s57
    %s60 = sphi 0, %s59
    %s74 = sphi 0, %s60
    %s78 = sphi 0, %s78
    %s80 = sphi 0, %s78
    %s81 = sphi 0, %s80
    %s95 = sphi 0, %s81
    %s103 = sphi 0, %s105
    %s106 = sphi 0, %s103
    %s107 = sphi 0, %s106
    %s123 = sphi 0, %s107
  $region4: #{linear_block.3} parent=0 // loop_header_branch
    %12 = sbr.rel (%p10) target = $region8
  $region5: #{linear_block.3} parent=0 // loop_body
    %s14 = ssub.s32 %s9, 1
    %s15 = ssub.s32 %s9, 2
    %s22 = sadd.s32 1, %s17
    %p23 = scmp.ge.s32.totalorder %s22, 1
    %s24 = scalar_select %p23, 0, %s22
    %s25 = sadd.s32 1, %s16
    %s26 = scalar_select %p23, %s25, %s16
    %p27 = scmp.ge.s32.totalorder %s26, 2
    %s28 = scalar_select %p27, 0, %s26
    %s29 = ssub.s32 %s16, %s28
    %s30 = ssub.s32 %s17, %s24
    %s31 = sor.u32 %s29, %s30
    %p32 = scmp.eq.s32.totalorder %s31, 0
    %s34 = sadd.s32 %s33, 1
    %s35 = scalar_select %p32, %s33, %s34
    %p38 = pneg %p32
    %p39 = scmp.eq.s32.totalorder %s9, 1
    %p40 = por %p38, %p39
    %p41 = scmp.ne.s32.totalorder %s33, %s36
    %p42 = scmp.eq.s32.totalorder %s9, 0
    %p43 = por %p41, %p42
    %p44 = scmp.ne.s32.totalorder %s33, %s36
    %p45 = scmp.eq.s32.totalorder %s14, 1
    %p46 = por %p44, %p45
    %p47 = scmp.ne.s32.totalorder %s36, %s37
    %p48 = scmp.eq.s32.totalorder %s14, 0
    %p49 = por %p47, %p48
    %p50 = scmp.ne.s32.totalorder %s36, %s37
    %p51 = scmp.eq.s32.totalorder %s15, 1
    %p52 = por %p50, %p51
    %p54 = scmp.ne.s32.totalorder %s37, %s53
    %p55 = scmp.eq.s32.totalorder %s15, 0
    %p56 = por %p54, %p55
    %s58 = sadd.s32 %s57, 1
    %p61 = scmp.eq.s32.totalorder %s9, 1
    %p62 = scmp.ne.s32.totalorder %s57, %s59
    %p63 = scmp.eq.s32.totalorder %s9, 0
    %p64 = por %p62, %p63
    %p65 = scmp.ne.s32.totalorder %s57, %s59
    %p66 = scmp.eq.s32.totalorder %s14, 1
    %p67 = por %p65, %p66
    %p68 = scmp.ne.s32.totalorder %s59, %s60
    %p69 = scmp.eq.s32.totalorder %s14, 0
    %p70 = por %p68, %p69
    %p71 = scmp.ne.s32.totalorder %s59, %s60
    %p72 = scmp.eq.s32.totalorder %s15, 1
    %p73 = por %p71, %p72
    %p75 = scmp.ne.s32.totalorder %s60, %s74
    %p76 = scmp.eq.s32.totalorder %s15, 0
    %p77 = por %p75, %p76
    %s79 = sadd.s32 %s78, 1
    %p82 = scmp.eq.s32.totalorder %s9, 1
    %p83 = scmp.ne.s32.totalorder %s78, %s80
    %p84 = scmp.eq.s32.totalorder %s9, 0
    %p85 = por %p83, %p84
    %p86 = scmp.ne.s32.totalorder %s78, %s80
    %p87 = scmp.eq.s32.totalorder %s14, 1
    %p88 = por %p86, %p87
    %p89 = scmp.ne.s32.totalorder %s80, %s81
    %p90 = scmp.eq.s32.totalorder %s14, 0
    %p91 = por %p89, %p90
    %p92 = scmp.ne.s32.totalorder %s80, %s81
    %p93 = scmp.eq.s32.totalorder %s15, 1
    %p94 = por %p92, %p93
    %p96 = scmp.ne.s32.totalorder %s81, %s95
    %p97 = scmp.eq.s32.totalorder %s15, 0
    %p98 = por %p96, %p97
    %s99 = ssub.s32 %s16, %s28
    %s100 = ssub.s32 %s17, %s24
    %s101 = sor.u32 %s99, %s100
    %p102 = scmp.eq.s32.totalorder %s101, 0
    %s104 = sadd.s32 %s103, 1
    %s105 = scalar_select %p102, %s103, %s104
    %p108 = pneg %p102
    %p109 = scmp.eq.s32.totalorder %s9, 1
    %p110 = por %p108, %p109
    %p111 = scmp.ne.s32.totalorder %s103, %s106
    %p112 = scmp.eq.s32.totalorder %s9, 0
    %p113 = por %p111, %p112
    %p114 = scmp.ne.s32.totalorder %s103, %s106
    %p115 = scmp.eq.s32.totalorder %s14, 1
    %p116 = por %p114, %p115
    %p117 = scmp.ne.s32.totalorder %s106, %s107
    %p118 = scmp.eq.s32.totalorder %s14, 0
    %p119 = por %p117, %p118
    %p120 = scmp.ne.s32.totalorder %s106, %s107
    %p121 = scmp.eq.s32.totalorder %s15, 1
    %p122 = por %p120, %p121
    %p124 = scmp.ne.s32.totalorder %s107, %s123
    %p125 = scmp.eq.s32.totalorder %s15, 0
    %p126 = por %p124, %p125
    %p127 = scmp.le.s32.totalorder 1, %s9
    %p128 = scmp.lt.s32.totalorder %s9, 3
    %p129 = pnand %p127, %p128
    %p130 = pneg %p129
    // Predicated region
    $region9: #{linear_block.3} parent=5 // pred_check
      _
    $region10: #{linear_block.3} parent=5 // pred_check_branch
      %132 = sbr.rel (%p129) target = $region12
    $region11: #{linear_block.3} parent=5 // pred_region
      %s133 = ssub.s32 %s9, 1
      // Predicated region
      $region13: #{linear_block.3} parent=11 // pred_check
        %p134 = pneg %p70
      $region14: #{linear_block.3} parent=11 // pred_check_branch
        %136 = sbr.rel (%p134) target = $region16
      $region15: #{linear_block.3} parent=11 // pred_region
        _
      $region16: #{linear_block.3} parent=11 // pred_fallthru
        _
      // Predicated region
      $region17: #{linear_block.3} parent=11 // pred_check
        %p137 = pneg %p91
      $region18: #{linear_block.3} parent=11 // pred_check_branch
        %139 = sbr.rel (%p137) target = $region20
      $region19: #{linear_block.3} parent=11 // pred_region
        _
      $region20: #{linear_block.3} parent=11 // pred_fallthru
        _
    $region12: #{linear_block.3} parent=5 // pred_fallthru
      _
    %p140 = scmp.lt.s32.totalorder %s9, 2
    // Predicated region
    $region21: #{linear_block.3} parent=5 // pred_check
      %p141 = pneg %p140
    $region22: #{linear_block.3} parent=5 // pred_check_branch
      %143 = sbr.rel (%p141) target = $region24
    $region23: #{linear_block.3} parent=5 // pred_region
      // Predicated region
      $region25: #{linear_block.3} parent=23 // pred_check
        %p144 = pneg %p43
      $region26: #{linear_block.3} parent=23 // pred_check_branch
        %146 = sbr.rel (%p144) target = $region28
      $region27: #{linear_block.3} parent=23 // pred_region
        %s147 = smul.u32 2, %s17
        %p148 = scmp.lt.s32.totalorder %s16, 1
        %s149 = scalar_select %p148, %s16, 1
        %p150 = scmp.lt.s32.totalorder %s147, 1
        %s151 = scalar_select %p150, %s147, 1
        %s152 = smul.addr %s149, 2
        %s153 = sadd.s32 %s151, %s152
        %s154 = smul.addr %s153, 4
        %s155 = scalar_lea.vmem %s0, %s154
        %s156 = smul.u32 2, %s17
      $region28: #{linear_block.3} parent=23 // pred_fallthru
        _
    $region24: #{linear_block.3} parent=5 // pred_fallthru
      _
    %p157 = scmp.le.s32.totalorder 1, %s9
    %p158 = scmp.lt.s32.totalorder %s9, 3
    %p159 = pnand %p157, %p158
    %p160 = pneg %p159
    // Predicated region
    $region29: #{linear_block.3} parent=5 // pred_check
      _
    $region30: #{linear_block.3} parent=5 // pred_check_branch
      %162 = sbr.rel (%p159) target = $region32
    $region31: #{linear_block.3} parent=5 // pred_region
      %s163 = ssub.s32 %s9, 1
      %s164 = smul.u32 2, %s19
      %p165 = scmp.lt.s32.totalorder %s18, 1
      %s166 = scalar_select %p165, %s18, 1
      %p167 = scmp.lt.s32.totalorder %s164, 1
      %s168 = scalar_select %p167, %s164, 1
      %s169 = smul.addr %s166, 2
      %s170 = sadd.s32 %s168, %s169
      %s171 = smul.addr %s170, 4
      %s172 = scalar_lea.vmem %s0, %s171
      %p173 = pneg %p49
      %p174 = pneg %p46
      %p175 = pneg %p70
      %p176 = pneg %p67
      %p177 = pneg %p91
      %p178 = pneg %p88
      %p179 = pneg %p119
      %p180 = pneg %p116
      %s181 = smul.u32 2, %s19
      %p182 = scmp.lt.s32.totalorder %s18, 1
      %s183 = scalar_select %p182, %s18, 1
      %p184 = scmp.lt.s32.totalorder %s181, 1
      %s185 = scalar_select %p184, %s181, 1
      %s186 = smul.addr %s183, 2
      %s187 = sadd.s32 %s185, %s186
      %s188 = smul.addr %s187, 8
      %s189 = scalar_lea.vmem %s3, %s188
      %s190 = smul.u32 2, %s19
      %p191 = scmp.lt.s32.totalorder %s18, 1
      %s192 = scalar_select %p191, %s18, 1
      %p193 = scmp.lt.s32.totalorder %s190, 1
      %s194 = scalar_select %p193, %s190, 1
      %s195 = smul.addr %s192, 2
      %s196 = sadd.s32 %s194, %s195
      %s197 = smul.addr %s196, 4
      %s198 = scalar_lea.vmem %s0, %s197
      %s199 = smul.u32 2, %s19
      %s200 = smul.u32 2, %s19
      %p201 = scmp.lt.s32.totalorder %s18, 1
      %s202 = scalar_select %p201, %s18, 1
      %p203 = scmp.lt.s32.totalorder %s200, 1
      %s204 = scalar_select %p203, %s200, 1
      %s205 = smul.addr %s202, 2
      %s206 = sadd.s32 %s204, %s205
      %s207 = smul.addr %s206, 8
      %s208 = scalar_lea.vmem %s3, %s207
      %s209 = smul.u32 2, %s19
      %v210 = vld [vmem:[%s198] sm:$0xff]
      %v211 = vld [vmem:[%s1] sm:$0xff]
      %v212 = vld [vmem:[%s2] sm:$0xff]
      %214 = vset.pattern.permute.xlu0 0
      %215 = vperm.xlu0 %214, %v212
      %v216 = vpop.permute.xlu0 %215
      %219 = vst [vmem:[#allocation1] ss:$2 sm:$0xff] %v210
      %v220 = vld.sshfl [vmem:[#allocation1] sm:$0xff pattern:$0x75316420]
      %v221 = vld.sshfl [vmem:[#allocation1 + $0x8] sm:$0xff pattern:$0x75316420]
      %vm222 = vcmask 31744
      %v224 = vsel %vm222, %v211, 0
      %vm226 = vcmask 1043456
      %v227 = vsel %vm226, %v220, 0
      %v229 = vsel %vm226, %v221, 0
      %231 = vmatpush.msra.mxu0 0.0
      %232 = vmatpush.msra.mxu0 0.0
      %233 = vmatpush.msra.mxu0 0.0
      %234 = vmatpush.msra.mxu0 0.0
      %235 = vmatpush.msra.mxu0 0.0
      %236 = vmatpush.msra.mxu0 0.0
      %237 = vmatpush.msra.mxu0 0.0
      %238 = vmatpush.msra.mxu0 0.0
      %239 = vmatpush.msra.mxu0 0.0
      %240 = vmatpush.msra.mxu0 0.0
      %241 = vmatpush.msra.mxu0 0.0
      %242 = vmatpush.msra.mxu0 0.0
      %243 = vmatpush.msra.mxu0 0.0
      %244 = vmatpush.msra.mxu0 0.0
      %245 = vmatpush.msra.mxu0 0.0
      %246 = vmatpush.msra.mxu0 %v227
      %247 = vmatmul.f32.gmra.mxu0 %v224
      %v248 = vpop.f32.mrf.mxu0
      %v249 = vadd.f32 %v216, %v248
      %250 = vdwg.mxu0
      %251 = vmatpush.msra.mxu0 0.0
      %252 = vmatpush.msra.mxu0 0.0
      %253 = vmatpush.msra.mxu0 0.0
      %254 = vmatpush.msra.mxu0 0.0
      %255 = vmatpush.msra.mxu0 0.0
      %256 = vmatpush.msra.mxu0 0.0
      %257 = vmatpush.msra.mxu0 0.0
      %258 = vmatpush.msra.mxu0 0.0
      %259 = vmatpush.msra.mxu0 0.0
      %260 = vmatpush.msra.mxu0 0.0
      %261 = vmatpush.msra.mxu0 0.0
      %262 = vmatpush.msra.mxu0 0.0
      %263 = vmatpush.msra.mxu0 0.0
      %264 = vmatpush.msra.mxu0 0.0
      %265 = vmatpush.msra.mxu0 0.0
      %266 = vmatpush.msra.mxu0 %v229
      %267 = vmatmul.f32.gmra.mxu0 %v224
      %v268 = vpop.f32.mrf.mxu0
      %v269 = vadd.f32 %v216, %v268
      %270 = vdwg.mxu0
      %271 = vst [vmem:[%s208] sm:$0xff] %v249
      %272 = vst [vmem:[%s208 + $0x8] sm:$0xff] %v269
      %s273 = smul.u32 2, %s19
      %p274 = scmp.lt.s32.totalorder %s18, 1
      %s275 = scalar_select %p274, %s18, 1
      %p276 = scmp.lt.s32.totalorder %s273, 1
      %s277 = scalar_select %p276, %s273, 1
      %s278 = smul.addr %s275, 2
      %s279 = sadd.s32 %s277, %s278
      %s280 = smul.addr %s279, 8
      %s281 = scalar_lea.vmem %s3, %s280
      // Predicated region
      $region33: #{linear_block.3} parent=31 // pred_check
        %p282 = pneg %p116
      $region34: #{linear_block.3} parent=31 // pred_check_branch
        %284 = sbr.rel (%p282) target = $region36
      $region35: #{linear_block.3} parent=31 // pred_region
        %s285 = smul.u32 2, %s19
      $region36: #{linear_block.3} parent=31 // pred_fallthru
        _
    $region32: #{linear_block.3} parent=5 // pred_fallthru
      _
    %p286 = scmp.le.s32.totalorder 2, %s9
    // Predicated region
    $region37: #{linear_block.3} parent=5 // pred_check
      %p287 = pneg %p286
    $region38: #{linear_block.3} parent=5 // pred_check_branch
      %289 = sbr.rel (%p287) target = $region40
    $region39: #{linear_block.3} parent=5 // pred_region
      %s290 = ssub.s32 %s9, 2
      // Predicated region
      $region41: #{linear_block.3} parent=39 // pred_check
        %p291 = pneg %p122
      $region42: #{linear_block.3} parent=39 // pred_check_branch
        %293 = sbr.rel (%p291) target = $region44
      $region43: #{linear_block.3} parent=39 // pred_region
        %s294 = smul.u32 2, %s21
        %p295 = scmp.lt.s32.totalorder %s20, 1
        %s296 = scalar_select %p295, %s20, 1
        %p297 = scmp.lt.s32.totalorder %s294, 1
        %s298 = scalar_select %p297, %s294, 1
        %s299 = smul.addr %s296, 2
        %s300 = sadd.s32 %s298, %s299
        %s301 = smul.addr %s300, 8
        %s302 = scalar_lea.vmem %s3, %s301
      $region44: #{linear_block.3} parent=39 // pred_fallthru
        _
    $region40: #{linear_block.3} parent=5 // pred_fallthru
      _
  $region6: #{linear_block.3} parent=0 // loop_footer
    %s13 = sadd.s32 1, %s9
  $region7: #{linear_block.3} parent=0 // loop_footer_branch
    %8 = sbr.rel target = $region3
  $region8: #{linear_block.3} parent=0 // loop_exit
    _

</llo_original>
